<compile_context>
chip_gen: v6e
topology: v6e:2x2x1
jax: 0.10.0
libtpu: 0.0.40
codegen_flags: <defaults>
</compile_context>

<pallas_src>
import jax
import jax.numpy as jnp
from jax.experimental import pallas as pl
from jax.experimental.pallas import tpu as pltpu


_LANE = 128          # TPU vreg lane width
_MAX_TILE = 32768    # keep f32 hidden intermediates well inside v7x's 64 MiB VMEM


def _round_up(x, m):
    return ((x + m - 1) // m) * m


def _sigmoid(x):
    # Exact identity sigmoid(x) = 0.5 * (1 + tanh(x/2)): one EUP op (tanh)
    # plus cheap VPU mul/add, instead of exp + exact divide.
    return 0.5 * jnp.tanh(0.5 * x) + 0.5


def _mlp_kernel(zt_ref, w1_ref, b1_ref, w2_ref, b2_ref, w3_ref, b3_ref, ot_ref):
    # Activations laid out (features, batch): batch on the 128-lane axis.
    # Columns (samples) are independent end-to-end, so unspecified data in a
    # ragged last block cannot contaminate valid columns.
    x = zt_ref[...]                                                    # (in, T)

    # Layer 1: Linear + Sigmoid   (W is PyTorch-layout (out, in) -> W @ x)
    h = jnp.dot(w1_ref[...], x, preferred_element_type=jnp.float32)   # (h0, T)
    h = _sigmoid(h + b1_ref[...])                                     # f32 elementwise

    # Layer 2: Linear + Sigmoid
    h = jnp.dot(w2_ref[...], h.astype(w2_ref.dtype),
                preferred_element_type=jnp.float32)                   # (h1, T)
    h = _sigmoid(h + b2_ref[...])

    # Output layer: Linear (no activation)
    out = jnp.dot(w3_ref[...], h.astype(w3_ref.dtype),
                  preferred_element_type=jnp.float32)                 # (out, T)
    ot_ref[...] = (out + b3_ref[...]).astype(ot_ref.dtype)


def mlp_discriminator_forward(z, params, *, batch_tile=8192, io_dtype=None):
    """MLPDiscriminator forward via a Pallas TPU kernel.

    z:      (B, input_dim) float32 (any B; ragged last tile handled by Pallas).
    params: ((W1, b1), (W2, b2), (W3, b3)) in PyTorch layout:
            W_k of shape (out_k, in_k), b_k of shape (out_k,).
    batch_tile: target batch tile (rounded to a multiple of 128, clamped).
    io_dtype:   optional storage dtype for z / weights (e.g. jnp.bfloat16 on
                v6e/v7x). Accumulation and elementwise math stay in f32.
                Note: expect ~bf16-level output error vs an f32 reference.
    """
    (w1, b1), (w2, b2), (w3, b3) = params
    B, input_dim = z.shape
    h0, h1, out_dim = w1.shape[0], w2.shape[0], w3.shape[0]
    assert w1.shape[1] == input_dim and w2.shape[1] == h0 and w3.shape[1] == h1

    # Batch lives on the lane axis -> tile must be a multiple of 128.
    tile = min(_round_up(batch_tile, _LANE), _round_up(B, _LANE), _MAX_TILE)
    tile = max(tile, _LANE)
    grid = (pl.cdiv(B, tile),)

    # (features, batch) layout. No zero-padded copy: Pallas masks the ragged
    # last block's output writes; padded columns never reach the result.
    zt = z.T

    if io_dtype is not None:  # optional bandwidth saving on bf16-native chips
        zt = zt.astype(io_dtype)
        w1, w2, w3 = (w.astype(io_dtype) for w in (w1, w2, w3))

    # Biases broadcast along lanes (batch): shape (features, 1), kept in f32.
    b1c = b1.reshape(h0, 1).astype(jnp.float32)
    b2c = b2.reshape(h1, 1).astype(jnp.float32)
    b3c = b3.reshape(out_dim, 1).astype(jnp.float32)

    # Weights/biases are tiny and grid-invariant: untiled, resident in VMEM.
    resident = pl.BlockSpec(memory_space=pltpu.MemorySpace.VMEM)

    out_t = pl.pallas_call(
        _mlp_kernel,
        out_shape=jax.ShapeDtypeStruct((out_dim, B), z.dtype),
        grid_spec=pltpu.PrefetchScalarGridSpec(
            num_scalar_prefetch=0,
            grid=grid,
            in_specs=[
                pl.BlockSpec((input_dim, tile), lambda i: (0, i)),
                resident, resident,   # W1, b1
                resident, resident,   # W2, b2
                resident, resident,   # W3, b3
            ],
            out_specs=pl.BlockSpec((out_dim, tile), lambda i: (0, i)),
        ),
        compiler_params=pltpu.CompilerParams(
            dimension_semantics=("parallel",),
        ),
    )(zt, w1, b1c, w2, b2c, w3, b3c)

    # (out_dim, B) -> (B, out_dim); for out_dim == 1 this is a free reshape.
    return out_t.T


def init_params(key, input_dim, hidden_dims, output_dim):
    """nn.Linear-style init, PyTorch layout: W (out, in), b (out,)."""
    dims = [input_dim] + list(hidden_dims) + [output_dim]
    params = []
    for fan_in, fan_out in zip(dims[:-1], dims[1:]):
        key, kw, kb = jax.random.split(key, 3)
        bound = 1.0 / (float(fan_in) ** 0.5)
        w = jax.random.uniform(kw, (fan_out, fan_in), jnp.float32, -bound, bound)
        b = jax.random.uniform(kb, (fan_out,), jnp.float32, -bound, bound)
        params.append((w, b))
    return tuple(params)


def mlp_reference(z, params):
    (w1, b1), (w2, b2), (w3, b3) = params
    h = jax.nn.sigmoid(z @ w1.T + b1)
    h = jax.nn.sigmoid(h @ w2.T + b2)
    return h @ w3.T + b3


if __name__ == "__main__":
    key = jax.random.PRNGKey(0)
    k_z, k_p, k_z2 = jax.random.split(key, 3)

    input_dim, hidden_dims, output_dim = 2, (32, 32), 1
    params = init_params(k_p, input_dim, hidden_dims, output_dim)

    # Small demo case consistent with the module: batch=8 (single grid step).
    batch = 8
    z = jax.random.normal(k_z, (batch, input_dim), jnp.float32)
    out = mlp_discriminator_forward(z, params)
    out = jax.block_until_ready(out)
    ref = mlp_reference(z, params)
    assert out.shape == (batch, output_dim), out.shape
    assert jnp.allclose(out, ref, atol=1e-5, rtol=1e-5), "mismatch vs reference"

    # Non-divisible batch exercising multiple tiles + masked ragged tail.
    batch2 = 200
    z2 = jax.random.normal(k_z2, (batch2, input_dim), jnp.float32)
    out2 = mlp_discriminator_forward(z2, params, batch_tile=128)
    out2 = jax.block_until_ready(out2)
    ref2 = mlp_reference(z2, params)
    assert out2.shape == (batch2, output_dim), out2.shape
    assert jnp.allclose(out2, ref2, atol=1e-5, rtol=1e-5), "mismatch vs reference (ragged)"

    print("KERNEL_OK")
</pallas_src>

<mosaic_0001>
module attributes {stable_mosaic.version = 11 : i64} {
  func.func @_mlp_kernel(%arg0: i32, %arg1: memref<2x128xf32, #tpu.memory_space<vmem>>, %arg2: memref<32x2xf32, #tpu.memory_space<vmem>>, %arg3: memref<32x1xf32, #tpu.memory_space<vmem>>, %arg4: memref<32x32xf32, #tpu.memory_space<vmem>>, %arg5: memref<32x1xf32, #tpu.memory_space<vmem>>, %arg6: memref<1x32xf32, #tpu.memory_space<vmem>>, %arg7: memref<1x1xf32, #tpu.memory_space<vmem>>, %arg8: memref<1x128xf32, #tpu.memory_space<vmem>>) attributes {dimension_semantics = [#tpu.dimension_semantics<parallel>], iteration_bounds = array<i64: 1>, scalar_prefetch = 0 : i64, scratch_operands = 0 : i64, tpu.core_type = #tpu.core_type<tc>, window_params = [{transform_indices = @transform_0, window_bounds = array<i64: 2, 128>}, {pipeline_mode = #tpu.pipeline_mode<synchronous>, transform_indices = @transform_1, window_bounds = array<i64: 32, 2>}, {pipeline_mode = #tpu.pipeline_mode<synchronous>, transform_indices = @transform_2, window_bounds = array<i64: 32, 1>}, {pipeline_mode = #tpu.pipeline_mode<synchronous>, transform_indices = @transform_3, window_bounds = array<i64: 32, 32>}, {pipeline_mode = #tpu.pipeline_mode<synchronous>, transform_indices = @transform_4, window_bounds = array<i64: 32, 1>}, {pipeline_mode = #tpu.pipeline_mode<synchronous>, transform_indices = @transform_5, window_bounds = array<i64: 1, 32>}, {pipeline_mode = #tpu.pipeline_mode<synchronous>, transform_indices = @transform_6, window_bounds = array<i64: 1, 1>}, {transform_indices = @transform_7, window_bounds = array<i64: 1, 128>}]} {
    %c0 = arith.constant 0 : index
    %c0_0 = arith.constant 0 : index
    %0 = vector.load %arg1[%c0, %c0_0] : memref<2x128xf32, #tpu.memory_space<vmem>>, vector<2x128xf32>
    %c0_1 = arith.constant 0 : index
    %c0_2 = arith.constant 0 : index
    %1 = vector.load %arg2[%c0_1, %c0_2] : memref<32x2xf32, #tpu.memory_space<vmem>>, vector<32x2xf32>
    %cst = arith.constant dense<0.000000e+00> : vector<32x128xf32>
    %2 = tpu.matmul %1, %0, %cst {dimension_numbers = #tpu.dot_dimension_numbers<[1], [0], [0], [1], [0, 0, 1, 1], [], []>} : vector<32x2xf32>, vector<2x128xf32>, vector<32x128xf32> -> vector<32x128xf32>
    %c0_3 = arith.constant 0 : index
    %c0_4 = arith.constant 0 : index
    %3 = vector.load %arg3[%c0_3, %c0_4] : memref<32x1xf32, #tpu.memory_space<vmem>>, vector<32x1xf32>
    %4 = vector.broadcast %3 : vector<32x1xf32> to vector<32x128xf32>
    %5 = arith.addf %2, %4 : vector<32x128xf32>
    %cst_5 = arith.constant 5.000000e-01 : f32
    %6 = vector.broadcast %cst_5 : f32 to vector<32x128xf32>
    %7 = arith.mulf %6, %5 : vector<32x128xf32>
    %8 = math.tanh %7 : vector<32x128xf32>
    %cst_6 = arith.constant 5.000000e-01 : f32
    %9 = vector.broadcast %cst_6 : f32 to vector<32x128xf32>
    %10 = arith.mulf %9, %8 : vector<32x128xf32>
    %cst_7 = arith.constant 5.000000e-01 : f32
    %11 = vector.broadcast %cst_7 : f32 to vector<32x128xf32>
    %12 = arith.addf %10, %11 : vector<32x128xf32>
    %c0_8 = arith.constant 0 : index
    %c0_9 = arith.constant 0 : index
    %13 = vector.load %arg4[%c0_8, %c0_9] : memref<32x32xf32, #tpu.memory_space<vmem>>, vector<32x32xf32>
    %cst_10 = arith.constant dense<0.000000e+00> : vector<32x128xf32>
    %14 = tpu.matmul %13, %12, %cst_10 {dimension_numbers = #tpu.dot_dimension_numbers<[1], [0], [0], [1], [0, 0, 1, 1], [], []>} : vector<32x32xf32>, vector<32x128xf32>, vector<32x128xf32> -> vector<32x128xf32>
    %c0_11 = arith.constant 0 : index
    %c0_12 = arith.constant 0 : index
    %15 = vector.load %arg5[%c0_11, %c0_12] : memref<32x1xf32, #tpu.memory_space<vmem>>, vector<32x1xf32>
    %16 = vector.broadcast %15 : vector<32x1xf32> to vector<32x128xf32>
    %17 = arith.addf %14, %16 : vector<32x128xf32>
    %cst_13 = arith.constant 5.000000e-01 : f32
    %18 = vector.broadcast %cst_13 : f32 to vector<32x128xf32>
    %19 = arith.mulf %18, %17 : vector<32x128xf32>
    %20 = math.tanh %19 : vector<32x128xf32>
    %cst_14 = arith.constant 5.000000e-01 : f32
    %21 = vector.broadcast %cst_14 : f32 to vector<32x128xf32>
    %22 = arith.mulf %21, %20 : vector<32x128xf32>
    %cst_15 = arith.constant 5.000000e-01 : f32
    %23 = vector.broadcast %cst_15 : f32 to vector<32x128xf32>
    %24 = arith.addf %22, %23 : vector<32x128xf32>
    %c0_16 = arith.constant 0 : index
    %c0_17 = arith.constant 0 : index
    %25 = vector.load %arg6[%c0_16, %c0_17] : memref<1x32xf32, #tpu.memory_space<vmem>>, vector<1x32xf32>
    %cst_18 = arith.constant dense<0.000000e+00> : vector<1x128xf32>
    %26 = tpu.matmul %25, %24, %cst_18 {dimension_numbers = #tpu.dot_dimension_numbers<[1], [0], [0], [1], [0, 0, 1, 1], [], []>} : vector<1x32xf32>, vector<32x128xf32>, vector<1x128xf32> -> vector<1x128xf32>
    %c0_19 = arith.constant 0 : index
    %c0_20 = arith.constant 0 : index
    %27 = vector.load %arg7[%c0_19, %c0_20] : memref<1x1xf32, #tpu.memory_space<vmem>>, vector<1x1xf32>
    %28 = vector.broadcast %27 : vector<1x1xf32> to vector<1x128xf32>
    %29 = arith.addf %26, %28 : vector<1x128xf32>
    %c0_21 = arith.constant 0 : index
    %c0_22 = arith.constant 0 : index
    %30 = vector.load %arg8[%c0_21, %c0_22] : memref<1x128xf32, #tpu.memory_space<vmem>>, vector<1x128xf32>
    tpu.vector_store %arg8[%c0_21, %c0_22], %29 {strides = array<i32>} : memref<1x128xf32, #tpu.memory_space<vmem>>, vector<1x128xf32>,
    return
  }
  func.func @transform_0(%arg0: i32) -> (i32, i32) {
    %c0_i32 = arith.constant 0 : i32
    %c0_i32_0 = arith.constant 0 : i32
    return %c0_i32, %arg0 : i32, i32
  }
  func.func @transform_1(%arg0: i32) -> (i32, i32) {
    %c0_i32 = arith.constant 0 : i32
    %c0_i32_0 = arith.constant 0 : i32
    %c0_i32_1 = arith.constant 0 : i32
    return %c0_i32, %c0_i32_0 : i32, i32
  }
  func.func @transform_2(%arg0: i32) -> (i32, i32) {
    %c0_i32 = arith.constant 0 : i32
    %c0_i32_0 = arith.constant 0 : i32
    %c0_i32_1 = arith.constant 0 : i32
    return %c0_i32, %c0_i32_0 : i32, i32
  }
  func.func @transform_3(%arg0: i32) -> (i32, i32) {
    %c0_i32 = arith.constant 0 : i32
    %c0_i32_0 = arith.constant 0 : i32
    %c0_i32_1 = arith.constant 0 : i32
    return %c0_i32, %c0_i32_0 : i32, i32
  }
  func.func @transform_4(%arg0: i32) -> (i32, i32) {
    %c0_i32 = arith.constant 0 : i32
    %c0_i32_0 = arith.constant 0 : i32
    %c0_i32_1 = arith.constant 0 : i32
    return %c0_i32, %c0_i32_0 : i32, i32
  }
  func.func @transform_5(%arg0: i32) -> (i32, i32) {
    %c0_i32 = arith.constant 0 : i32
    %c0_i32_0 = arith.constant 0 : i32
    %c0_i32_1 = arith.constant 0 : i32
    return %c0_i32, %c0_i32_0 : i32, i32
  }
  func.func @transform_6(%arg0: i32) -> (i32, i32) {
    %c0_i32 = arith.constant 0 : i32
    %c0_i32_0 = arith.constant 0 : i32
    %c0_i32_1 = arith.constant 0 : i32
    return %c0_i32, %c0_i32_0 : i32, i32
  }
  func.func @transform_7(%arg0: i32) -> (i32, i32) {
    %c0_i32 = arith.constant 0 : i32
    %c0_i32_0 = arith.constant 0 : i32
    return %c0_i32, %arg0 : i32, i32
  }
}

</mosaic_0001>

<llo_original>
// kernel: tpu_custom_call.1
$region0: #{tpu_custom_call.1}
  #allocation0 [shape = 'u32[]', space=smem, size = 0x4, offset = 0x4, fixed_abs, tag = 'smem constant byte address 0x4 - core index']
  #allocation1 [shape = 'u32[144,128]{1,0:T(1,128)}', space=vmem, size = 0x12000, scoped, tag = 'internal scratch']
  #allocation2 [shape = 'f32[1,1]{1,0:T(1,128)S(1)}', space=vmem, size = 0x200, scoped, tag = 'scoped memory for tpu_custom_call.1']
  %s0 = inlined_call_operand.vmem [shape: f32[2,8], index: 0, kind: input, shape index: {}]
  %s1 = inlined_call_operand.vmem [shape: f32[32,2], index: 1, kind: input, shape index: {}]
  %s2 = inlined_call_operand.vmem [shape: f32[32,1], index: 2, kind: input, shape index: {}]
  %s3 = inlined_call_operand.vmem [shape: f32[32,32], index: 3, kind: input, shape index: {}]
  %s4 = inlined_call_operand.vmem [shape: f32[32,1], index: 4, kind: input, shape index: {}]
  %s5 = inlined_call_operand.vmem [shape: f32[1,32], index: 5, kind: input, shape index: {}]
  %s6 = inlined_call_operand.<no memory space> [shape: f32[1,1], index: 6, kind: input, shape index: {}]
  %s7 = inlined_call_operand.hbm [shape: f32[1,8], index: 7, kind: output, shape index: {}]
  %s8 = sld [smem:[#allocation0]]
  $region38: #{tpu_custom_call.1} parent=0
    _
  %s10 = ssub.s32 1, %s8
  %s11 = scalar_select 0, %s10, %s8
  %v12 = vstv %s6
  %13 = vst [vmem:[#allocation2] sm:$0x1] %v12
  $region1: #{tpu_custom_call.1} parent=0
    #allocation3 [shape = 'u8[512]{0}', space=vmem, size = 0x400, scoped, tag = 'output window, operand 0, single buffered']
    #allocation4 [shape = 's32[1]{0}', space=sflag, size = 0x4, scoped, tag = 'scoped memory for tpu_custom_call.1']
    %14 = vsyncpa [#allocation4], 0
    // Predicated region
    $region2: #{tpu_custom_call.1} parent=1 // pred_check
      _
    $region3: #{tpu_custom_call.1} parent=1 // pred_check_branch
      %16 = sbr.rel (0) target = $region5
    $region4: #{tpu_custom_call.1} parent=1 // pred_region
      _
    $region5: #{tpu_custom_call.1} parent=1 // pred_fallthru
      _
    // Predicated region
    $region6: #{tpu_custom_call.1} parent=1 // pred_check
      _
    $region7: #{tpu_custom_call.1} parent=1 // pred_check_branch
      %18 = sbr.rel (0) target = $region9
    $region8: #{tpu_custom_call.1} parent=1 // pred_region
      _
    $region9: #{tpu_custom_call.1} parent=1 // pred_fallthru
      _
    // Predicated region
    $region10: #{tpu_custom_call.1} parent=1 // pred_check
      _
    $region11: #{tpu_custom_call.1} parent=1 // pred_check_branch
      %20 = sbr.rel (0) target = $region13
    $region12: #{tpu_custom_call.1} parent=1 // pred_region
      _
    $region13: #{tpu_custom_call.1} parent=1 // pred_fallthru
      _
    // Predicated region
    $region14: #{tpu_custom_call.1} parent=1 // pred_check
      _
    $region15: #{tpu_custom_call.1} parent=1 // pred_check_branch
      %22 = sbr.rel (0) target = $region17
    $region16: #{tpu_custom_call.1} parent=1 // pred_region
      _
    $region17: #{tpu_custom_call.1} parent=1 // pred_fallthru
      _
    // Predicated region
    $region18: #{tpu_custom_call.1} parent=1 // pred_check
      _
    $region19: #{tpu_custom_call.1} parent=1 // pred_check_branch
      %24 = sbr.rel (0) target = $region21
    $region20: #{tpu_custom_call.1} parent=1 // pred_region
      _
    $region21: #{tpu_custom_call.1} parent=1 // pred_fallthru
      _
    // Predicated region
    $region22: #{tpu_custom_call.1} parent=1 // pred_check
      _
    $region23: #{tpu_custom_call.1} parent=1 // pred_check_branch
      %26 = sbr.rel (0) target = $region25
    $region24: #{tpu_custom_call.1} parent=1 // pred_region
      _
    $region25: #{tpu_custom_call.1} parent=1 // pred_fallthru
      _
    // Predicated region
    $region26: #{tpu_custom_call.1} parent=1 // pred_check
      _
    $region27: #{tpu_custom_call.1} parent=1 // pred_check_branch
      %28 = sbr.rel (0) target = $region29
    $region28: #{tpu_custom_call.1} parent=1 // pred_region
      _
    $region29: #{tpu_custom_call.1} parent=1 // pred_fallthru
      _
    %v29 = vld [vmem:[%s0] sm:$0x3]
    %v30 = vld [vmem:[%s1] sm:$0xff]
    %v31 = vld [vmem:[%s1 + $0x8] sm:$0xff]
    %v32 = vld [vmem:[%s1 + $0x10] sm:$0xff]
    %v33 = vld [vmem:[%s1 + $0x18] sm:$0xff]
    %v34 = vld [vmem:[%s2] sm:$0xff]
    %v35 = vld [vmem:[%s2 + $0x8] sm:$0xff]
    %v36 = vld [vmem:[%s2 + $0x10] sm:$0xff]
    %v37 = vld [vmem:[%s2 + $0x18] sm:$0xff]
    %39 = vset.pattern.permute.xlu0 0
    %40 = vperm.xlu0 %39, %v34
    %v41 = vpop.permute.xlu0 %40
    %44 = vset.pattern.permute.xlu0 0
    %45 = vperm.xlu0 %44, %v35
    %v46 = vpop.permute.xlu0 %45
    %49 = vset.pattern.permute.xlu0 0
    %50 = vperm.xlu0 %49, %v36
    %v51 = vpop.permute.xlu0 %50
    %54 = vset.pattern.permute.xlu0 0
    %55 = vperm.xlu0 %54, %v37
    %v56 = vpop.permute.xlu0 %55
    %vm58 = vcmask 15360
    %v60 = vsel %vm58, %v30, 0
    %v63 = vsel %vm58, %v31, 0
    %v66 = vsel %vm58, %v32, 0
    %v69 = vsel %vm58, %v33, 0
    %vm71 = vcmask 1041408
    %v73 = vsel %vm71, %v29, 0
    %75 = vmatprep.subr.mxu0 0.0
    %76 = vmatpush1.msra.mxu0 0.0
    %77 = vmatprep.subr.mxu0 0.0
    %78 = vmatpush1.msra.mxu0 0.0
    %79 = vmatprep.subr.mxu0 0.0
    %80 = vmatpush1.msra.mxu0 0.0
    %81 = vmatprep.subr.mxu0 0.0
    %82 = vmatpush1.msra.mxu0 0.0
    %83 = vmatprep.subr.mxu0 0.0
    %84 = vmatpush1.msra.mxu0 0.0
    %85 = vmatprep.subr.mxu0 0.0
    %86 = vmatpush1.msra.mxu0 0.0
    %87 = vmatprep.subr.mxu0 0.0
    %88 = vmatpush1.msra.mxu0 0.0
    %89 = vmatprep.subr.mxu0 0.0
    %90 = vmatpush1.msra.mxu0 0.0
    %91 = vmatprep.subr.mxu0 0.0
    %92 = vmatpush1.msra.mxu0 0.0
    %93 = vmatprep.subr.mxu0 0.0
    %94 = vmatpush1.msra.mxu0 0.0
    %95 = vmatprep.subr.mxu0 0.0
    %96 = vmatpush1.msra.mxu0 0.0
    %97 = vmatprep.subr.mxu0 0.0
    %98 = vmatpush1.msra.mxu0 0.0
    %99 = vmatprep.subr.mxu0 0.0
    %100 = vmatpush1.msra.mxu0 0.0
    %101 = vmatprep.subr.mxu0 0.0
    %102 = vmatpush1.msra.mxu0 0.0
    %103 = vmatprep.subr.mxu0 0.0
    %104 = vmatpush1.msra.mxu0 0.0
    %105 = vmatprep.subr.mxu0 0.0
    %106 = vmatpush1.msra.mxu0 %v73
    %107 = vmatprep.subr.mxu0 0.0
    %108 = vmatpush2.msra.mxu0 0.0
    %109 = vmatprep.subr.mxu0 0.0
    %110 = vmatpush2.msra.mxu0 0.0
    %111 = vmatprep.subr.mxu0 0.0
    %112 = vmatpush2.msra.mxu0 0.0
    %113 = vmatprep.subr.mxu0 0.0
    %114 = vmatpush2.msra.mxu0 0.0
    %115 = vmatprep.subr.mxu0 0.0
    %116 = vmatpush2.msra.mxu0 0.0
    %117 = vmatprep.subr.mxu0 0.0
    %118 = vmatpush2.msra.mxu0 0.0
    %119 = vmatprep.subr.mxu0 0.0
    %120 = vmatpush2.msra.mxu0 0.0
    %121 = vmatprep.subr.mxu0 0.0
    %122 = vmatpush2.msra.mxu0 0.0
    %123 = vmatprep.subr.mxu0 0.0
    %124 = vmatpush2.msra.mxu0 0.0
    %125 = vmatprep.subr.mxu0 0.0
    %126 = vmatpush2.msra.mxu0 0.0
    %127 = vmatprep.subr.mxu0 0.0
    %128 = vmatpush2.msra.mxu0 0.0
    %129 = vmatprep.subr.mxu0 0.0
    %130 = vmatpush2.msra.mxu0 0.0
    %131 = vmatprep.subr.mxu0 0.0
    %132 = vmatpush2.msra.mxu0 0.0
    %133 = vmatprep.subr.mxu0 0.0
    %134 = vmatpush2.msra.mxu0 0.0
    %135 = vmatprep.subr.mxu0 0.0
    %136 = vmatpush2.msra.mxu0 0.0
    %137 = vmatprep.subr.mxu0 0.0
    %138 = vmatpush2.msra.mxu0 0.0
    %139 = vmatprep.mubr.f32.mxu0 0.0
    %140 = vmatmul.mubr.f32.gmra.mxu0 %v60
    %v141 = vpop.f32.mrf.mxu0
    %v142 = vadd.f32 %v41, %v141
    %v143 = vpop.f32.mrf.mxu0
    %144 = vmatprep.mubr.f32.mxu0 0.0
    %145 = vmatmul.mubr.f32.gmra.mxu0 %v63
    %v146 = vpop.f32.mrf.mxu0
    %v147 = vadd.f32 %v46, %v146
    %v148 = vpop.f32.mrf.mxu0
    %149 = vmatprep.mubr.f32.mxu0 0.0
    %150 = vmatmul.mubr.f32.gmra.mxu0 %v66
    %v151 = vpop.f32.mrf.mxu0
    %v152 = vadd.f32 %v51, %v151
    %v153 = vpop.f32.mrf.mxu0
    %154 = vmatprep.mubr.f32.mxu0 0.0
    %155 = vmatmul.mubr.f32.gmra.mxu0 %v69
    %v156 = vpop.f32.mrf.mxu0
    %v157 = vadd.f32 %v56, %v156
    %v158 = vpop.f32.mrf.mxu0
    %159 = vdwg.mxu0
    %v160 = vmul.f32 %v142, 0.5
    %v161 = vmul.f32 %v147, 0.5
    %v162 = vmul.f32 %v152, 0.5
    %v163 = vmul.f32 %v157, 0.5
    %v164 = vtanh.pop %v160
    %v165 = vtanh.pop %v161
    %v166 = vtanh.pop %v162
    %v167 = vtanh.pop %v163
    %v168 = vmul.f32 %v164, 0.5
    %v169 = vmul.f32 %v165, 0.5
    %v170 = vmul.f32 %v166, 0.5
    %v171 = vmul.f32 %v167, 0.5
    %v172 = vadd.f32 %v168, 0.5
    %v173 = vadd.f32 %v169, 0.5
    %v174 = vadd.f32 %v170, 0.5
    %v175 = vadd.f32 %v171, 0.5
    %v176 = vld [vmem:[%s3] sm:$0xff]
    %v177 = vld [vmem:[%s3 + $0x8] sm:$0xff]
    %v178 = vld [vmem:[%s3 + $0x10] sm:$0xff]
    %v179 = vld [vmem:[%s3 + $0x18] sm:$0xff]
    %v180 = vld [vmem:[%s4] sm:$0xff]
    %v181 = vld [vmem:[%s4 + $0x8] sm:$0xff]
    %v182 = vld [vmem:[%s4 + $0x10] sm:$0xff]
    %v183 = vld [vmem:[%s4 + $0x18] sm:$0xff]
    %185 = vset.pattern.permute.xlu0 0
    %186 = vperm.xlu0 %185, %v180
    %v187 = vpop.permute.xlu0 %186
    %190 = vset.pattern.permute.xlu0 0
    %191 = vperm.xlu0 %190, %v181
    %v192 = vpop.permute.xlu0 %191
    %195 = vset.pattern.permute.xlu0 0
    %196 = vperm.xlu0 %195, %v182
    %v197 = vpop.permute.xlu0 %196
    %200 = vset.pattern.permute.xlu0 0
    %201 = vperm.xlu0 %200, %v183
    %v202 = vpop.permute.xlu0 %201
    %vm204 = vcmask 261120
    %v206 = vsel %vm204, %v176, 0
    %v209 = vsel %vm204, %v177, 0
    %v212 = vsel %vm204, %v178, 0
    %v215 = vsel %vm204, %v179, 0
    %217 = vmatprep.subr.mxu0 0.0
    %218 = vmatpush1.msra.mxu0 0.0
    %219 = vmatprep.subr.mxu0 0.0
    %220 = vmatpush1.msra.mxu0 0.0
    %221 = vmatprep.subr.mxu0 0.0
    %222 = vmatpush1.msra.mxu0 0.0
    %223 = vmatprep.subr.mxu0 0.0
    %224 = vmatpush1.msra.mxu0 0.0
    %225 = vmatprep.subr.mxu0 0.0
    %226 = vmatpush1.msra.mxu0 0.0
    %227 = vmatprep.subr.mxu0 0.0
    %228 = vmatpush1.msra.mxu0 0.0
    %229 = vmatprep.subr.mxu0 0.0
    %230 = vmatpush1.msra.mxu0 0.0
    %231 = vmatprep.subr.mxu0 0.0
    %232 = vmatpush1.msra.mxu0 0.0
    %233 = vmatprep.subr.mxu0 0.0
    %234 = vmatpush1.msra.mxu0 0.0
    %235 = vmatprep.subr.mxu0 0.0
    %236 = vmatpush1.msra.mxu0 0.0
    %237 = vmatprep.subr.mxu0 0.0
    %238 = vmatpush1.msra.mxu0 0.0
    %239 = vmatprep.subr.mxu0 0.0
    %240 = vmatpush1.msra.mxu0 0.0
    %241 = vmatprep.subr.mxu0 0.0
    %242 = vmatpush1.msra.mxu0 %v175
    %243 = vmatprep.subr.mxu0 0.0
    %244 = vmatpush1.msra.mxu0 %v174
    %245 = vmatprep.subr.mxu0 0.0
    %246 = vmatpush1.msra.mxu0 %v173
    %247 = vmatprep.subr.mxu0 0.0
    %248 = vmatpush1.msra.mxu0 %v172
    %249 = vmatprep.subr.mxu0 0.0
    %250 = vmatpush2.msra.mxu0 0.0
    %251 = vmatprep.subr.mxu0 0.0
    %252 = vmatpush2.msra.mxu0 0.0
    %253 = vmatprep.subr.mxu0 0.0
    %254 = vmatpush2.msra.mxu0 0.0
    %255 = vmatprep.subr.mxu0 0.0
    %256 = vmatpush2.msra.mxu0 0.0
    %257 = vmatprep.subr.mxu0 0.0
    %258 = vmatpush2.msra.mxu0 0.0
    %259 = vmatprep.subr.mxu0 0.0
    %260 = vmatpush2.msra.mxu0 0.0
    %261 = vmatprep.subr.mxu0 0.0
    %262 = vmatpush2.msra.mxu0 0.0
    %263 = vmatprep.subr.mxu0 0.0
    %264 = vmatpush2.msra.mxu0 0.0
    %265 = vmatprep.subr.mxu0 0.0
    %266 = vmatpush2.msra.mxu0 0.0
    %267 = vmatprep.subr.mxu0 0.0
    %268 = vmatpush2.msra.mxu0 0.0
    %269 = vmatprep.subr.mxu0 0.0
    %270 = vmatpush2.msra.mxu0 0.0
    %271 = vmatprep.subr.mxu0 0.0
    %272 = vmatpush2.msra.mxu0 0.0
    %273 = vmatprep.subr.mxu0 0.0
    %274 = vmatpush2.msra.mxu0 0.0
    %275 = vmatprep.subr.mxu0 0.0
    %276 = vmatpush2.msra.mxu0 0.0
    %277 = vmatprep.subr.mxu0 0.0
    %278 = vmatpush2.msra.mxu0 0.0
    %279 = vmatprep.subr.mxu0 0.0
    %280 = vmatpush2.msra.mxu0 0.0
    %281 = vmatprep.mubr.f32.mxu0 0.0
    %282 = vmatmul.mubr.f32.gmra.mxu0 %v206
    %v283 = vpop.f32.mrf.mxu0
    %v284 = vadd.f32 %v187, %v283
    %v285 = vpop.f32.mrf.mxu0
    %286 = vmatprep.mubr.f32.mxu0 0.0
    %287 = vmatmul.mubr.f32.gmra.mxu0 %v209
    %v288 = vpop.f32.mrf.mxu0
    %v289 = vadd.f32 %v192, %v288
    %v290 = vpop.f32.mrf.mxu0
    %291 = vmatprep.mubr.f32.mxu0 0.0
    %292 = vmatmul.mubr.f32.gmra.mxu0 %v212
    %v293 = vpop.f32.mrf.mxu0
    %v294 = vadd.f32 %v197, %v293
    %v295 = vpop.f32.mrf.mxu0
    %296 = vmatprep.mubr.f32.mxu0 0.0
    %297 = vmatmul.mubr.f32.gmra.mxu0 %v215
    %v298 = vpop.f32.mrf.mxu0
    %v299 = vadd.f32 %v202, %v298
    %v300 = vpop.f32.mrf.mxu0
    %301 = vdwg.mxu0
    %v302 = vmul.f32 %v284, 0.5
    %v303 = vmul.f32 %v289, 0.5
    %v304 = vmul.f32 %v294, 0.5
    %v305 = vmul.f32 %v299, 0.5
    %v306 = vtanh.pop %v302
    %v307 = vtanh.pop %v303
    %v308 = vtanh.pop %v304
    %v309 = vtanh.pop %v305
    %v310 = vmul.f32 %v306, 0.5
    %v311 = vmul.f32 %v307, 0.5
    %v312 = vmul.f32 %v308, 0.5
    %v313 = vmul.f32 %v309, 0.5
    %v314 = vadd.f32 %v310, 0.5
    %v315 = vadd.f32 %v311, 0.5
    %v316 = vadd.f32 %v312, 0.5
    %v317 = vadd.f32 %v313, 0.5
    %v318 = vld [vmem:[%s5] sm:$0x1]
    %v319 = vld [vmem:[#allocation2] sm:$0x1]
    %321 = vset.pattern.permute.xlu0 0
    %322 = vperm.xlu0 %321, %v319
    %v323 = vpop.permute.xlu0 %322
    %v325 = vlaneseq
    %v326 = vshrl.u32 %v325, 7
    %v327 = vsub.s32 0, %v326
    %v328 = vrot.slane %v323, %v327
    %v330 = vsel %vm204, %v318, 0
    %332 = vmatprep.subr.mxu0 0.0
    %333 = vmatpush1.msra.mxu0 0.0
    %334 = vmatprep.subr.mxu0 0.0
    %335 = vmatpush1.msra.mxu0 0.0
    %336 = vmatprep.subr.mxu0 0.0
    %337 = vmatpush1.msra.mxu0 0.0
    %338 = vmatprep.subr.mxu0 0.0
    %339 = vmatpush1.msra.mxu0 0.0
    %340 = vmatprep.subr.mxu0 0.0
    %341 = vmatpush1.msra.mxu0 0.0
    %342 = vmatprep.subr.mxu0 0.0
    %343 = vmatpush1.msra.mxu0 0.0
    %344 = vmatprep.subr.mxu0 0.0
    %345 = vmatpush1.msra.mxu0 0.0
    %346 = vmatprep.subr.mxu0 0.0
    %347 = vmatpush1.msra.mxu0 0.0
    %348 = vmatprep.subr.mxu0 0.0
    %349 = vmatpush1.msra.mxu0 0.0
    %350 = vmatprep.subr.mxu0 0.0
    %351 = vmatpush1.msra.mxu0 0.0
    %352 = vmatprep.subr.mxu0 0.0
    %353 = vmatpush1.msra.mxu0 0.0
    %354 = vmatprep.subr.mxu0 0.0
    %355 = vmatpush1.msra.mxu0 0.0
    %356 = vmatprep.subr.mxu0 0.0
    %357 = vmatpush1.msra.mxu0 %v317
    %358 = vmatprep.subr.mxu0 0.0
    %359 = vmatpush1.msra.mxu0 %v316
    %360 = vmatprep.subr.mxu0 0.0
    %361 = vmatpush1.msra.mxu0 %v315
    %362 = vmatprep.subr.mxu0 0.0
    %363 = vmatpush1.msra.mxu0 %v314
    %364 = vmatprep.subr.mxu0 0.0
    %365 = vmatpush2.msra.mxu0 0.0
    %366 = vmatprep.subr.mxu0 0.0
    %367 = vmatpush2.msra.mxu0 0.0
    %368 = vmatprep.subr.mxu0 0.0
    %369 = vmatpush2.msra.mxu0 0.0
    %370 = vmatprep.subr.mxu0 0.0
    %371 = vmatpush2.msra.mxu0 0.0
    %372 = vmatprep.subr.mxu0 0.0
    %373 = vmatpush2.msra.mxu0 0.0
    %374 = vmatprep.subr.mxu0 0.0
    %375 = vmatpush2.msra.mxu0 0.0
    %376 = vmatprep.subr.mxu0 0.0
    %377 = vmatpush2.msra.mxu0 0.0
    %378 = vmatprep.subr.mxu0 0.0
    %379 = vmatpush2.msra.mxu0 0.0
    %380 = vmatprep.subr.mxu0 0.0
    %381 = vmatpush2.msra.mxu0 0.0
    %382 = vmatprep.subr.mxu0 0.0
    %383 = vmatpush2.msra.mxu0 0.0
    %384 = vmatprep.subr.mxu0 0.0
    %385 = vmatpush2.msra.mxu0 0.0
    %386 = vmatprep.subr.mxu0 0.0
    %387 = vmatpush2.msra.mxu0 0.0
    %388 = vmatprep.subr.mxu0 0.0
    %389 = vmatpush2.msra.mxu0 0.0
    %390 = vmatprep.subr.mxu0 0.0
    %391 = vmatpush2.msra.mxu0 0.0
    %392 = vmatprep.subr.mxu0 0.0
    %393 = vmatpush2.msra.mxu0 0.0
    %394 = vmatprep.subr.mxu0 0.0
    %395 = vmatpush2.msra.mxu0 0.0
    %396 = vmatprep.mubr.f32.mxu0 0.0
    %397 = vmatmul.mubr.f32.gmra.mxu0 %v330
    %v398 = vpop.f32.mrf.mxu0
    %v399 = vadd.f32 %v328, %v398
    %v400 = vpop.f32.mrf.mxu0
    %401 = vdwg.mxu0
    %402 = vst [vmem:[#allocation3] sm:$0x1] %v399
    // Predicated region
    $region30: #{tpu_custom_call.1} parent=1 // pred_check
      _
    $region31: #{tpu_custom_call.1} parent=1 // pred_check_branch
      %404 = sbr.rel (0) target = $region33
    $region32: #{tpu_custom_call.1} parent=1 // pred_region
      %s406 = ssub.s32 16, 16
      %407 = vsyncadd [#allocation4], %s406
      %s409 = sshll.u32 [#allocation3], 4
      %s410 = int_to_ptr.vmem [resolvable:$true] %s409
      %412 = dma.vmem_to_hbm [thread:$0]  %s410, 16, %s7, [#allocation4]
    $region33: #{tpu_custom_call.1} parent=1 // pred_fallthru
      _
    // Predicated region
    $region34: #{tpu_custom_call.1} parent=1 // pred_check
      _
    $region35: #{tpu_custom_call.1} parent=1 // pred_check_branch
      %414 = sbr.rel (0) target = $region37
    $region36: #{tpu_custom_call.1} parent=1 // pred_region
      %415 = dma.done [#allocation4], 16
    $region37: #{tpu_custom_call.1} parent=1 // pred_fallthru
      _
    %416 = vsyncpa [#allocation4], 1

</llo_original>
